<compile_context>
chip_gen: v6e
topology: v6e:2x2x1
jax: 0.10.0
libtpu: 0.0.40
codegen_flags: <defaults>
</compile_context>

<pallas_src>
import functools
import math

import jax
import jax.numpy as jnp
import numpy as np
from jax.experimental import pallas as pl
from jax.experimental.pallas import tpu as pltpu


def _modconv1x1_bias_clamp_kernel(wmod_ref, x_ref, b_ref, o_ref, *, clamp):
    """One (batch, spatial-tile) step: out = wmod @ x + bias (+ clamp).

    wmod_ref: (1, Cout, Cin)  x.dtype  pre-modulated 1x1 weight for this batch
    x_ref:    (1, Cin, PT)    x.dtype  input pixels, channel-major
    b_ref:    (Cout, 1)       f32      bias
    o_ref:    (1, Cout, PT)   x.dtype  lane-dense output tile
    """
    acc = jnp.dot(wmod_ref[0], x_ref[0],
                  preferred_element_type=jnp.float32)        # (Cout, PT) f32
    acc = acc + b_ref[...]                                   # f32 bias add
    if clamp is not None:
        acc = jnp.clip(acc, -clamp, clamp)
    o_ref[0] = acc.astype(o_ref.dtype)


def _cdiv(a, b):
    return -(-a // b)


def _choose_spatial_tiling(P, n_batch, bytes_per_lane,
                           target_bytes=2 << 20, full_bytes=4 << 20):
    """Pick (pt, P_pad): spatial tile and padded spatial extent (pt | P_pad).

    Tile size is a byte-budget decision (~target_bytes of x+out per grid step,
    lane dim a multiple of 128). When n_batch == 1 we keep >= 2 spatial tiles
    so both v7x TensorCores have work.
    """
    if P * bytes_per_lane <= full_bytes and not (n_batch == 1 and P >= 256):
        return P, P                       # single full block (always layout-legal)
    units_total = _cdiv(P, 128)           # number of 128-lane units
    target_units = max(1, target_bytes // (bytes_per_lane * 128))
    if n_batch == 1:
        target_units = min(target_units, max(1, units_total // 2))
    units = int(min(units_total, target_units))
    pt = units * 128
    P_pad = _cdiv(P, pt) * pt
    return pt, P_pad


class ToRGBLayerPallas:
    """JAX/Pallas port of ToRGBLayer (kernel_size=1, demodulate=False path)."""

    def __init__(self, in_channels, out_channels, w_dim, kernel_size=1,
                 conv_clamp=None, channels_last=False, key=None):
        if kernel_size != 1:
            # TODO(synk): kernel_size > 1 spatial conv not implemented; ToRGBLayer always uses 1x1.
            raise NotImplementedError("only kernel_size=1 supported")
        del channels_last  # torch memory-format hint; layout handled explicitly here.
        self.in_channels = in_channels
        self.out_channels = out_channels
        self.w_dim = w_dim
        self.kernel_size = kernel_size
        self.conv_clamp = conv_clamp
        self.weight_gain = 1.0 / math.sqrt(in_channels * kernel_size ** 2)

        if key is None:
            key = jax.random.PRNGKey(0)
        k_aff, k_w = jax.random.split(key)
        # FullyConnectedLayer(w_dim, in_channels, bias_init=1), lr_multiplier=1
        self.affine_weight = jax.random.normal(
            k_aff, (in_channels, w_dim), jnp.float32)            # (out=Cin, in=w_dim)
        self.affine_bias = jnp.full((in_channels,), 1.0, jnp.float32)
        self.affine_weight_gain = 1.0 / math.sqrt(w_dim)
        # torch.randn([out_channels, in_channels, k, k])
        self.weight = jax.random.normal(
            k_w, (out_channels, in_channels, 1, 1), jnp.float32)
        self.bias = jnp.zeros((out_channels,), jnp.float32)

        # ---- constants folded once (not rebuilt per __call__) ----
        gain = self.affine_weight_gain * self.weight_gain
        self._a_eff = (self.affine_weight.T * gain).astype(jnp.float32)          # (w_dim, Cin)
        self._b_eff = (self.affine_bias * self.weight_gain).astype(jnp.float32)  # (Cin,)
        self._wmat = self.weight[:, :, 0, 0].astype(jnp.float32)                 # (Cout, Cin)
        self._bvec = self.bias.reshape(out_channels, 1).astype(jnp.float32)      # (Cout, 1)

    def __call__(self, x, w, fused_modconv=True):
        # With demodulate=False, fused and non-fused modconv are mathematically
        # identical; both map to the same kernel here.
        del fused_modconv
        N, Cin, H, W = x.shape
        assert Cin == self.in_channels
        Cout = self.out_channels
        assert w.shape == (N, self.w_dim)

        # ---- styles + per-batch modulated weight, hoisted to plain jnp ----
        # styles = affine(w) * weight_gain ; wmod = (weight * styles) in f32, then
        # cast to x.dtype (matches the PyTorch fused path's w.to(x.dtype)).
        styles = jnp.dot(w.astype(jnp.float32), self._a_eff) + self._b_eff    # (N, Cin)
        wmod = (self._wmat[None, :, :] * styles[:, None, :]).astype(x.dtype)  # (N,Cout,Cin)

        # ---- byte-budgeted spatial tiling (NCHW preserved, channel-major) ----
        P = H * W
        itemsize = jnp.dtype(x.dtype).itemsize
        bytes_per_lane = (Cin + Cout) * itemsize        # x + out bytes per spatial lane
        pt, P_pad = _choose_spatial_tiling(P, N, bytes_per_lane)
        n_tiles = P_pad // pt

        x2 = x.reshape(N, Cin, P)                       # free reshape, no relayout
        if P_pad != P:
            x2 = jnp.pad(x2, ((0, 0), (0, 0), (0, P_pad - P)))

        kernel = functools.partial(_modconv1x1_bias_clamp_kernel,
                                   clamp=self.conv_clamp)
        wmod_spec = pl.BlockSpec((1, Cout, Cin), lambda n, t: (n, 0, 0))
        bias_spec = pl.BlockSpec((Cout, 1), lambda n, t: (0, 0))
        out_spec = pl.BlockSpec((1, Cout, pt), lambda n, t: (n, 0, t))
        out_shape = jax.ShapeDtypeStruct((N, Cout, P_pad), x.dtype)

        def run(x_buffers):
            if x_buffers is None:
                x_spec = pl.BlockSpec((1, Cin, pt), lambda n, t: (n, 0, t))
                n_xbuf = 2
            else:
                x_spec = pl.BlockSpec((1, Cin, pt), lambda n, t: (n, 0, t),
                                      pipeline_mode=pl.Buffered(x_buffers))
                n_xbuf = x_buffers
            # VMEM budget: deep-buffered x + double-buffered small operands/output,
            # clamped to a range safe for v5e/v6e/v7x scoped limits.
            vmem_needed = (n_xbuf * Cin * pt * itemsize
                           + 2 * (Cout * pt * itemsize
                                  + Cout * Cin * itemsize
                                  + Cout * 4))
            vmem_limit = int(min(max(vmem_needed + (2 << 20), 16 << 20), 48 << 20))
            return pl.pallas_call(
                kernel,
                out_shape=out_shape,
                grid=(N, n_tiles),
                in_specs=[wmod_spec, x_spec, bias_spec],
                out_specs=out_spec,
                compiler_params=pltpu.CompilerParams(
                    dimension_semantics=("parallel", "parallel"),
                    vmem_limit_bytes=vmem_limit),
            )(wmod, x2, self._bvec)

        out = None
        if hasattr(pl, "Buffered"):
            try:
                # Pipeline is pure DMA (compute ~0): a 3rd in-flight x buffer
                # hides DMA issue latency. Falls back cleanly if unsupported.
                out = run(3)
            except Exception:
                out = None
        if out is None:
            out = run(None)

        if P_pad != P:
            out = out[:, :, :P]
        return out.reshape(N, Cout, H, W)


def _reference(layer: ToRGBLayerPallas, x, w):
    """Pure-JAX f32 reference (affine -> modulated 1x1 conv -> bias -> clamp)."""
    x32 = x.astype(jnp.float32)
    a_eff = layer.affine_weight * layer.affine_weight_gain
    styles = (w.astype(jnp.float32) @ a_eff.T + layer.affine_bias) * layer.weight_gain
    wmat = layer.weight[:, :, 0, 0]
    y = jnp.einsum('oc,nc,nchw->nohw', wmat, styles, x32)
    y = y + layer.bias.reshape(1, -1, 1, 1)
    if layer.conv_clamp is not None:
        y = jnp.clip(y, -layer.conv_clamp, layer.conv_clamp)
    return y


if __name__ == "__main__":
    key = jax.random.PRNGKey(0)
    k_x, k_w, k_p1, k_p2, k_x2, k_w2 = jax.random.split(key, 6)

    N, Cin, Cout, w_dim, H, W = 2, 4, 3, 8, 16, 16
    x = jax.random.normal(k_x, (N, Cin, H, W), dtype=jnp.float32)
    w_lat = jax.random.normal(k_w, (N, w_dim), dtype=jnp.float32)

    # f32, no clamp (single full spatial block path)
    layer = ToRGBLayerPallas(Cin, Cout, w_dim, conv_clamp=None, key=k_p1)
    y = jax.block_until_ready(layer(x, w_lat))
    y_ref = jax.block_until_ready(_reference(layer, x, w_lat))
    np.testing.assert_allclose(np.asarray(y), np.asarray(y_ref),
                               rtol=1e-5, atol=1e-5)

    # f32, with an active clamp
    layer_c = ToRGBLayerPallas(Cin, Cout, w_dim, conv_clamp=0.5, key=k_p2)
    y_c = jax.block_until_ready(layer_c(x, w_lat))
    y_c_ref = jax.block_until_ready(_reference(layer_c, x, w_lat))
    np.testing.assert_allclose(np.asarray(y_c), np.asarray(y_c_ref),
                               rtol=1e-5, atol=1e-5)

    # bf16 activations -> bf16 MXU operands with f32 accumulation / f32 bias
    y_bf = jax.block_until_ready(layer(x.astype(jnp.bfloat16), w_lat))
    np.testing.assert_allclose(np.asarray(y_bf).astype(np.float32),
                               np.asarray(y_ref), rtol=5e-2, atol=1e-1)

    # N=1, non-128-multiple spatial (20x20): exercises padding + >=2-tile grid
    x_odd = jax.random.normal(k_x2, (1, Cin, 20, 20), dtype=jnp.float32)
    w_odd = jax.random.normal(k_w2, (1, w_dim), dtype=jnp.float32)
    y_odd = jax.block_until_ready(layer(x_odd, w_odd))
    y_odd_ref = jax.block_until_ready(_reference(layer, x_odd, w_odd))
    np.testing.assert_allclose(np.asarray(y_odd), np.asarray(y_odd_ref),
                               rtol=1e-5, atol=1e-5)

    print("KERNEL_OK")
</pallas_src>

<mosaic_0001>
module attributes {stable_mosaic.version = 11 : i64} {
  func.func @_modconv1x1_bias_clamp_kernel(%arg0: i32, %arg1: i32, %arg2: memref<1x3x4xf32, #tpu.memory_space<vmem>>, %arg3: memref<1x4x256xf32, #tpu.memory_space<vmem>>, %arg4: memref<3x1xf32, #tpu.memory_space<vmem>>, %arg5: memref<1x3x256xf32, #tpu.memory_space<vmem>>) attributes {dimension_semantics = [#tpu.dimension_semantics<parallel>, #tpu.dimension_semantics<parallel>], iteration_bounds = array<i64: 2, 1>, scalar_prefetch = 0 : i64, scratch_operands = 0 : i64, tpu.core_type = #tpu.core_type<tc>, window_params = [{transform_indices = @transform_0, window_bounds = array<i64: 1, 3, 4>}, {transform_indices = @transform_1, window_bounds = array<i64: 1, 4, 256>}, {pipeline_mode = #tpu.pipeline_mode<synchronous>, transform_indices = @transform_2, window_bounds = array<i64: 3, 1>}, {transform_indices = @transform_3, window_bounds = array<i64: 1, 3, 256>}]} {
    %c0 = arith.constant 0 : index
    %c0_0 = arith.constant 0 : index
    %c0_1 = arith.constant 0 : index
    %0 = vector.load %arg2[%c0, %c0_0, %c0_1] : memref<1x3x4xf32, #tpu.memory_space<vmem>>, vector<1x3x4xf32>
    %1 = vector.shape_cast %0 : vector<1x3x4xf32> to vector<3x4xf32>
    %c0_2 = arith.constant 0 : index
    %c0_3 = arith.constant 0 : index
    %c0_4 = arith.constant 0 : index
    %2 = vector.load %arg3[%c0_2, %c0_3, %c0_4] : memref<1x4x256xf32, #tpu.memory_space<vmem>>, vector<1x4x256xf32>
    %3 = vector.shape_cast %2 : vector<1x4x256xf32> to vector<4x256xf32>
    %cst = arith.constant dense<0.000000e+00> : vector<3x256xf32>
    %4 = tpu.matmul %1, %3, %cst {dimension_numbers = #tpu.dot_dimension_numbers<[1], [0], [0], [1], [0, 0, 1, 1], [], []>} : vector<3x4xf32>, vector<4x256xf32>, vector<3x256xf32> -> vector<3x256xf32>
    %c0_5 = arith.constant 0 : index
    %c0_6 = arith.constant 0 : index
    %5 = vector.load %arg4[%c0_5, %c0_6] : memref<3x1xf32, #tpu.memory_space<vmem>>, vector<3x1xf32>
    %6 = vector.broadcast %5 : vector<3x1xf32> to vector<3x256xf32>
    %7 = arith.addf %4, %6 : vector<3x256xf32>
    %c0_7 = arith.constant 0 : index
    %c0_8 = arith.constant 0 : index
    %c0_9 = arith.constant 0 : index
    %8 = vector.load %arg5[%c0_7, %c0_8, %c0_9] : memref<1x3x256xf32, #tpu.memory_space<vmem>>, vector<1x3x256xf32>
    %9 = vector.shape_cast %8 : vector<1x3x256xf32> to vector<3x256xf32>
    %10 = vector.shape_cast %7 : vector<3x256xf32> to vector<1x3x256xf32>
    tpu.vector_store %arg5[%c0_7, %c0_8, %c0_9], %10 {strides = array<i32>} : memref<1x3x256xf32, #tpu.memory_space<vmem>>, vector<1x3x256xf32>,
    return
  }
  func.func @transform_0(%arg0: i32, %arg1: i32) -> (i32, i32, i32) {
    %c0_i32 = arith.constant 0 : i32
    %c0_i32_0 = arith.constant 0 : i32
    %c0_i32_1 = arith.constant 0 : i32
    return %arg0, %c0_i32, %c0_i32_0 : i32, i32, i32
  }
  func.func @transform_1(%arg0: i32, %arg1: i32) -> (i32, i32, i32) {
    %c0_i32 = arith.constant 0 : i32
    %c0_i32_0 = arith.constant 0 : i32
    return %arg0, %c0_i32, %arg1 : i32, i32, i32
  }
  func.func @transform_2(%arg0: i32, %arg1: i32) -> (i32, i32) {
    %c0_i32 = arith.constant 0 : i32
    %c0_i32_0 = arith.constant 0 : i32
    %c0_i32_1 = arith.constant 0 : i32
    return %c0_i32, %c0_i32_0 : i32, i32
  }
  func.func @transform_3(%arg0: i32, %arg1: i32) -> (i32, i32, i32) {
    %c0_i32 = arith.constant 0 : i32
    %c0_i32_0 = arith.constant 0 : i32
    return %arg0, %c0_i32, %arg1 : i32, i32, i32
  }
}

</mosaic_0001>

<llo_original>
// kernel: tpu_custom_call.1
$region0: #{tpu_custom_call.1}
  #allocation0 [shape = 'u32[]', space=smem, size = 0x4, offset = 0x4, fixed_abs, tag = 'smem constant byte address 0x4 - core index']
  #allocation1 [shape = 'u32[144,128]{1,0:T(1,128)}', space=vmem, size = 0x12000, scoped, tag = 'internal scratch']
  %s0 = inlined_call_operand.vmem [shape: f32[2,3,4], index: 0, kind: input, shape index: {}]
  %s1 = inlined_call_operand.vmem [shape: f32[2,4,256], index: 1, kind: input, shape index: {}]
  %s2 = inlined_call_operand.vmem [shape: f32[3,1], index: 2, kind: input, shape index: {}]
  %s3 = inlined_call_operand.vmem [shape: f32[2,3,256], index: 3, kind: output, shape index: {}]
  %s4 = sld [smem:[#allocation0]]
  $region45: #{tpu_custom_call.1} parent=0
    _
  %s6 = ssub.s32 1, %s4
  %s7 = scalar_select 0, %s6, %s4
  loop: start=0, step=1, limit=4
  $region2: #{tpu_custom_call.1} parent=0 // loop_pre_header
    _
  $region3: #{tpu_custom_call.1} parent=0 // loop_header
    %s9 = sphi 0, %s13
    %p10 = scmp.ge.s32.totalorder %s9, 4
    %s16 = sphi 0, %s28
    %s17 = sphi 0, %s24
    %s18 = sphi 0, %s16
    %s19 = sphi 0, %s17
    %s20 = sphi 0, %s18
    %s21 = sphi 0, %s19
    %s31 = sphi 0, %s33
    %s34 = sphi 0, %s31
    %s35 = sphi 0, %s34
    %s51 = sphi 0, %s35
    %s59 = sphi 0, %s61
    %s62 = sphi 0, %s59
    %s63 = sphi 0, %s62
    %s79 = sphi 0, %s63
    %s83 = sphi 0, %s83
    %s85 = sphi 0, %s83
    %s86 = sphi 0, %s85
    %s100 = sphi 0, %s86
    %s108 = sphi 0, %s110
    %s111 = sphi 0, %s108
    %s112 = sphi 0, %s111
    %s128 = sphi 0, %s112
  $region4: #{tpu_custom_call.1} parent=0 // loop_header_branch
    %12 = sbr.rel (%p10) target = $region8
  $region5: #{tpu_custom_call.1} parent=0 // loop_body
    %s14 = ssub.s32 %s9, 1
    %s15 = ssub.s32 %s9, 2
    %s22 = sadd.s32 1, %s17
    %p23 = scmp.ge.s32.totalorder %s22, 1
    %s24 = scalar_select %p23, 0, %s22
    %s25 = sadd.s32 1, %s16
    %s26 = scalar_select %p23, %s25, %s16
    %p27 = scmp.ge.s32.totalorder %s26, 2
    %s28 = scalar_select %p27, 0, %s26
    %s29 = ssub.s32 %s16, %s28
    %p30 = scmp.eq.s32.totalorder %s29, 0
    %s32 = sadd.s32 %s31, 1
    %s33 = scalar_select %p30, %s31, %s32
    %p36 = pneg %p30
    %p37 = scmp.eq.s32.totalorder %s9, 1
    %p38 = por %p36, %p37
    %p39 = scmp.ne.s32.totalorder %s31, %s34
    %p40 = scmp.eq.s32.totalorder %s9, 0
    %p41 = por %p39, %p40
    %p42 = scmp.ne.s32.totalorder %s31, %s34
    %p43 = scmp.eq.s32.totalorder %s14, 1
    %p44 = por %p42, %p43
    %p45 = scmp.ne.s32.totalorder %s34, %s35
    %p46 = scmp.eq.s32.totalorder %s14, 0
    %p47 = por %p45, %p46
    %p48 = scmp.ne.s32.totalorder %s34, %s35
    %p49 = scmp.eq.s32.totalorder %s15, 1
    %p50 = por %p48, %p49
    %p52 = scmp.ne.s32.totalorder %s35, %s51
    %p53 = scmp.eq.s32.totalorder %s15, 0
    %p54 = por %p52, %p53
    %s55 = ssub.s32 %s16, %s28
    %s56 = ssub.s32 %s17, %s24
    %s57 = sor.u32 %s55, %s56
    %p58 = scmp.eq.s32.totalorder %s57, 0
    %s60 = sadd.s32 %s59, 1
    %s61 = scalar_select %p58, %s59, %s60
    %p64 = pneg %p58
    %p65 = scmp.eq.s32.totalorder %s9, 1
    %p66 = por %p64, %p65
    %p67 = scmp.ne.s32.totalorder %s59, %s62
    %p68 = scmp.eq.s32.totalorder %s9, 0
    %p69 = por %p67, %p68
    %p70 = scmp.ne.s32.totalorder %s59, %s62
    %p71 = scmp.eq.s32.totalorder %s14, 1
    %p72 = por %p70, %p71
    %p73 = scmp.ne.s32.totalorder %s62, %s63
    %p74 = scmp.eq.s32.totalorder %s14, 0
    %p75 = por %p73, %p74
    %p76 = scmp.ne.s32.totalorder %s62, %s63
    %p77 = scmp.eq.s32.totalorder %s15, 1
    %p78 = por %p76, %p77
    %p80 = scmp.ne.s32.totalorder %s63, %s79
    %p81 = scmp.eq.s32.totalorder %s15, 0
    %p82 = por %p80, %p81
    %s84 = sadd.s32 %s83, 1
    %p87 = scmp.eq.s32.totalorder %s9, 1
    %p88 = scmp.ne.s32.totalorder %s83, %s85
    %p89 = scmp.eq.s32.totalorder %s9, 0
    %p90 = por %p88, %p89
    %p91 = scmp.ne.s32.totalorder %s83, %s85
    %p92 = scmp.eq.s32.totalorder %s14, 1
    %p93 = por %p91, %p92
    %p94 = scmp.ne.s32.totalorder %s85, %s86
    %p95 = scmp.eq.s32.totalorder %s14, 0
    %p96 = por %p94, %p95
    %p97 = scmp.ne.s32.totalorder %s85, %s86
    %p98 = scmp.eq.s32.totalorder %s15, 1
    %p99 = por %p97, %p98
    %p101 = scmp.ne.s32.totalorder %s86, %s100
    %p102 = scmp.eq.s32.totalorder %s15, 0
    %p103 = por %p101, %p102
    %s104 = ssub.s32 %s16, %s28
    %s105 = ssub.s32 %s17, %s24
    %s106 = sor.u32 %s104, %s105
    %p107 = scmp.eq.s32.totalorder %s106, 0
    %s109 = sadd.s32 %s108, 1
    %s110 = scalar_select %p107, %s108, %s109
    %p113 = pneg %p107
    %p114 = scmp.eq.s32.totalorder %s9, 1
    %p115 = por %p113, %p114
    %p116 = scmp.ne.s32.totalorder %s108, %s111
    %p117 = scmp.eq.s32.totalorder %s9, 0
    %p118 = por %p116, %p117
    %p119 = scmp.ne.s32.totalorder %s108, %s111
    %p120 = scmp.eq.s32.totalorder %s14, 1
    %p121 = por %p119, %p120
    %p122 = scmp.ne.s32.totalorder %s111, %s112
    %p123 = scmp.eq.s32.totalorder %s14, 0
    %p124 = por %p122, %p123
    %p125 = scmp.ne.s32.totalorder %s111, %s112
    %p126 = scmp.eq.s32.totalorder %s15, 1
    %p127 = por %p125, %p126
    %p129 = scmp.ne.s32.totalorder %s112, %s128
    %p130 = scmp.eq.s32.totalorder %s15, 0
    %p131 = por %p129, %p130
    %p132 = scmp.le.s32.totalorder 1, %s9
    %p133 = scmp.lt.s32.totalorder %s9, 3
    %p134 = pnand %p132, %p133
    %p135 = pneg %p134
    // Predicated region
    $region9: #{tpu_custom_call.1} parent=5 // pred_check
      _
    $region10: #{tpu_custom_call.1} parent=5 // pred_check_branch
      %137 = sbr.rel (%p134) target = $region12
    $region11: #{tpu_custom_call.1} parent=5 // pred_region
      %s138 = ssub.s32 %s9, 1
      // Predicated region
      $region13: #{tpu_custom_call.1} parent=11 // pred_check
        %p139 = pneg %p96
      $region14: #{tpu_custom_call.1} parent=11 // pred_check_branch
        %141 = sbr.rel (%p139) target = $region16
      $region15: #{tpu_custom_call.1} parent=11 // pred_region
        _
      $region16: #{tpu_custom_call.1} parent=11 // pred_fallthru
        _
    $region12: #{tpu_custom_call.1} parent=5 // pred_fallthru
      _
    %p142 = scmp.lt.s32.totalorder %s9, 2
    // Predicated region
    $region17: #{tpu_custom_call.1} parent=5 // pred_check
      %p143 = pneg %p142
    $region18: #{tpu_custom_call.1} parent=5 // pred_check_branch
      %145 = sbr.rel (%p143) target = $region20
    $region19: #{tpu_custom_call.1} parent=5 // pred_region
      // Predicated region
      $region21: #{tpu_custom_call.1} parent=19 // pred_check
        %p146 = pneg %p41
      $region22: #{tpu_custom_call.1} parent=19 // pred_check_branch
        %148 = sbr.rel (%p146) target = $region24
      $region23: #{tpu_custom_call.1} parent=19 // pred_region
        %p149 = scmp.lt.s32.totalorder %s16, 1
        %s150 = scalar_select %p149, %s16, 1
        %s151 = smul.addr %s150, 4
        %s152 = scalar_lea.vmem %s0, %s151
      $region24: #{tpu_custom_call.1} parent=19 // pred_fallthru
        _
      // Predicated region
      $region25: #{tpu_custom_call.1} parent=19 // pred_check
        %p153 = pneg %p69
      $region26: #{tpu_custom_call.1} parent=19 // pred_check_branch
        %155 = sbr.rel (%p153) target = $region28
      $region27: #{tpu_custom_call.1} parent=19 // pred_region
        %s156 = smul.u32 2, %s17
        %p157 = scmp.lt.s32.totalorder %s16, 1
        %s158 = scalar_select %p157, %s16, 1
        %p159 = scmp.lt.s32.totalorder %s156, 1
        %s160 = scalar_select %p159, %s156, 1
        %s161 = smul.addr %s158, 2
        %s162 = sadd.s32 %s160, %s161
        %s163 = smul.addr %s162, 4
        %s164 = scalar_lea.vmem %s1, %s163
        %s165 = smul.u32 2, %s17
      $region28: #{tpu_custom_call.1} parent=19 // pred_fallthru
        _
    $region20: #{tpu_custom_call.1} parent=5 // pred_fallthru
      _
    %p166 = scmp.le.s32.totalorder 1, %s9
    %p167 = scmp.lt.s32.totalorder %s9, 3
    %p168 = pnand %p166, %p167
    %p169 = pneg %p168
    // Predicated region
    $region29: #{tpu_custom_call.1} parent=5 // pred_check
      _
    $region30: #{tpu_custom_call.1} parent=5 // pred_check_branch
      %171 = sbr.rel (%p168) target = $region32
    $region31: #{tpu_custom_call.1} parent=5 // pred_region
      %s172 = ssub.s32 %s9, 1
      %p173 = scmp.lt.s32.totalorder %s18, 1
      %s174 = scalar_select %p173, %s18, 1
      %s175 = smul.addr %s174, 4
      %s176 = scalar_lea.vmem %s0, %s175
      %p177 = pneg %p47
      %p178 = pneg %p44
      %s179 = smul.u32 2, %s19
      %p180 = scmp.lt.s32.totalorder %s18, 1
      %s181 = scalar_select %p180, %s18, 1
      %p182 = scmp.lt.s32.totalorder %s179, 1
      %s183 = scalar_select %p182, %s179, 1
      %s184 = smul.addr %s181, 2
      %s185 = sadd.s32 %s183, %s184
      %s186 = smul.addr %s185, 4
      %s187 = scalar_lea.vmem %s1, %s186
      %p188 = pneg %p75
      %p189 = pneg %p72
      %p190 = pneg %p96
      %p191 = pneg %p93
      %p192 = pneg %p124
      %p193 = pneg %p121
      %s194 = smul.u32 2, %s19
      %p195 = scmp.lt.s32.totalorder %s18, 1
      %s196 = scalar_select %p195, %s18, 1
      %p197 = scmp.lt.s32.totalorder %s194, 1
      %s198 = scalar_select %p197, %s194, 1
      %s199 = smul.addr %s196, 2
      %s200 = sadd.s32 %s198, %s199
      %s201 = smul.addr %s200, 4
      %s202 = scalar_lea.vmem %s3, %s201
      %p203 = scmp.lt.s32.totalorder %s18, 1
      %s204 = scalar_select %p203, %s18, 1
      %s205 = smul.addr %s204, 4
      %s206 = scalar_lea.vmem %s0, %s205
      %s207 = smul.u32 2, %s19
      %p208 = scmp.lt.s32.totalorder %s18, 1
      %s209 = scalar_select %p208, %s18, 1
      %p210 = scmp.lt.s32.totalorder %s207, 1
      %s211 = scalar_select %p210, %s207, 1
      %s212 = smul.addr %s209, 2
      %s213 = sadd.s32 %s211, %s212
      %s214 = smul.addr %s213, 4
      %s215 = scalar_lea.vmem %s1, %s214
      %s216 = smul.u32 2, %s19
      %s217 = smul.u32 2, %s19
      %p218 = scmp.lt.s32.totalorder %s18, 1
      %s219 = scalar_select %p218, %s18, 1
      %p220 = scmp.lt.s32.totalorder %s217, 1
      %s221 = scalar_select %p220, %s217, 1
      %s222 = smul.addr %s219, 2
      %s223 = sadd.s32 %s221, %s222
      %s224 = smul.addr %s223, 4
      %s225 = scalar_lea.vmem %s3, %s224
      %s226 = smul.u32 2, %s19
      %v227 = vld [vmem:[%s206] sm:$0x7]
      %v228 = vld [vmem:[%s215] sm:$0xff]
      %v229 = vld [vmem:[%s2] sm:$0x7]
      %231 = vset.pattern.permute.xlu0 0
      %232 = vperm.xlu0 %231, %v229
      %v233 = vpop.permute.xlu0 %232
      %v236 = vcombine.high %v228, %v228
      %vm237 = vcmask 31744
      %v239 = vsel %vm237, %v227, 0
      %vm241 = vcmask 1043456
      %v242 = vsel %vm241, %v228, 0
      %v244 = vsel %vm241, %v236, 0
      %246 = vmatprep.subr.mxu0 0.0
      %247 = vmatpush1.msra.mxu0 0.0
      %248 = vmatprep.subr.mxu0 0.0
      %249 = vmatpush1.msra.mxu0 0.0
      %250 = vmatprep.subr.mxu0 0.0
      %251 = vmatpush1.msra.mxu0 0.0
      %252 = vmatprep.subr.mxu0 0.0
      %253 = vmatpush1.msra.mxu0 0.0
      %254 = vmatprep.subr.mxu0 0.0
      %255 = vmatpush1.msra.mxu0 0.0
      %256 = vmatprep.subr.mxu0 0.0
      %257 = vmatpush1.msra.mxu0 0.0
      %258 = vmatprep.subr.mxu0 0.0
      %259 = vmatpush1.msra.mxu0 0.0
      %260 = vmatprep.subr.mxu0 0.0
      %261 = vmatpush1.msra.mxu0 0.0
      %262 = vmatprep.subr.mxu0 0.0
      %263 = vmatpush1.msra.mxu0 0.0
      %264 = vmatprep.subr.mxu0 0.0
      %265 = vmatpush1.msra.mxu0 0.0
      %266 = vmatprep.subr.mxu0 0.0
      %267 = vmatpush1.msra.mxu0 0.0
      %268 = vmatprep.subr.mxu0 0.0
      %269 = vmatpush1.msra.mxu0 0.0
      %270 = vmatprep.subr.mxu0 0.0
      %271 = vmatpush1.msra.mxu0 0.0
      %272 = vmatprep.subr.mxu0 0.0
      %273 = vmatpush1.msra.mxu0 0.0
      %274 = vmatprep.subr.mxu0 0.0
      %275 = vmatpush1.msra.mxu0 0.0
      %276 = vmatprep.subr.mxu0 %v244
      %277 = vmatpush1.msra.mxu0 %v242
      %278 = vmatprep.subr.mxu0 0.0
      %279 = vmatpush2.msra.mxu0 0.0
      %280 = vmatprep.subr.mxu0 0.0
      %281 = vmatpush2.msra.mxu0 0.0
      %282 = vmatprep.subr.mxu0 0.0
      %283 = vmatpush2.msra.mxu0 0.0
      %284 = vmatprep.subr.mxu0 0.0
      %285 = vmatpush2.msra.mxu0 0.0
      %286 = vmatprep.subr.mxu0 0.0
      %287 = vmatpush2.msra.mxu0 0.0
      %288 = vmatprep.subr.mxu0 0.0
      %289 = vmatpush2.msra.mxu0 0.0
      %290 = vmatprep.subr.mxu0 0.0
      %291 = vmatpush2.msra.mxu0 0.0
      %292 = vmatprep.subr.mxu0 0.0
      %293 = vmatpush2.msra.mxu0 0.0
      %294 = vmatprep.subr.mxu0 0.0
      %295 = vmatpush2.msra.mxu0 0.0
      %296 = vmatprep.subr.mxu0 0.0
      %297 = vmatpush2.msra.mxu0 0.0
      %298 = vmatprep.subr.mxu0 0.0
      %299 = vmatpush2.msra.mxu0 0.0
      %300 = vmatprep.subr.mxu0 0.0
      %301 = vmatpush2.msra.mxu0 0.0
      %302 = vmatprep.subr.mxu0 0.0
      %303 = vmatpush2.msra.mxu0 0.0
      %304 = vmatprep.subr.mxu0 0.0
      %305 = vmatpush2.msra.mxu0 0.0
      %306 = vmatprep.subr.mxu0 0.0
      %307 = vmatpush2.msra.mxu0 0.0
      %308 = vmatprep.subr.mxu0 0.0
      %309 = vmatpush2.msra.mxu0 0.0
      %310 = vmatprep.mubr.f32.mxu0 0.0
      %311 = vmatmul.mubr.f32.gmra.mxu0 %v239
      %v312 = vpop.f32.mrf.mxu0
      %v313 = vadd.f32 %v233, %v312
      %v314 = vpop.f32.mrf.mxu0
      %v315 = vadd.f32 %v233, %v314
      %316 = vdwg.mxu0
      %v319 = vcombine.low %v313, %v315
      %321 = vst [vmem:[%s225] sm:$0x77] %v319
      %s322 = smul.u32 2, %s19
      %p323 = scmp.lt.s32.totalorder %s18, 1
      %s324 = scalar_select %p323, %s18, 1
      %p325 = scmp.lt.s32.totalorder %s322, 1
      %s326 = scalar_select %p325, %s322, 1
      %s327 = smul.addr %s324, 2
      %s328 = sadd.s32 %s326, %s327
      %s329 = smul.addr %s328, 4
      %s330 = scalar_lea.vmem %s3, %s329
      // Predicated region
      $region33: #{tpu_custom_call.1} parent=31 // pred_check
        %p331 = pneg %p121
      $region34: #{tpu_custom_call.1} parent=31 // pred_check_branch
        %333 = sbr.rel (%p331) target = $region36
      $region35: #{tpu_custom_call.1} parent=31 // pred_region
        %s334 = smul.u32 2, %s19
      $region36: #{tpu_custom_call.1} parent=31 // pred_fallthru
        _
    $region32: #{tpu_custom_call.1} parent=5 // pred_fallthru
      _
    %p335 = scmp.le.s32.totalorder 2, %s9
    // Predicated region
    $region37: #{tpu_custom_call.1} parent=5 // pred_check
      %p336 = pneg %p335
    $region38: #{tpu_custom_call.1} parent=5 // pred_check_branch
      %338 = sbr.rel (%p336) target = $region40
    $region39: #{tpu_custom_call.1} parent=5 // pred_region
      %s339 = ssub.s32 %s9, 2
      // Predicated region
      $region41: #{tpu_custom_call.1} parent=39 // pred_check
        %p340 = pneg %p127
      $region42: #{tpu_custom_call.1} parent=39 // pred_check_branch
        %342 = sbr.rel (%p340) target = $region44
      $region43: #{tpu_custom_call.1} parent=39 // pred_region
        %s343 = smul.u32 2, %s21
        %p344 = scmp.lt.s32.totalorder %s20, 1
        %s345 = scalar_select %p344, %s20, 1
        %p346 = scmp.lt.s32.totalorder %s343, 1
        %s347 = scalar_select %p346, %s343, 1
        %s348 = smul.addr %s345, 2
        %s349 = sadd.s32 %s347, %s348
        %s350 = smul.addr %s349, 4
        %s351 = scalar_lea.vmem %s3, %s350
      $region44: #{tpu_custom_call.1} parent=39 // pred_fallthru
        _
    $region40: #{tpu_custom_call.1} parent=5 // pred_fallthru
      _
  $region6: #{tpu_custom_call.1} parent=0 // loop_footer
    %s13 = sadd.s32 1, %s9
  $region7: #{tpu_custom_call.1} parent=0 // loop_footer_branch
    %8 = sbr.rel target = $region3
  $region8: #{tpu_custom_call.1} parent=0 // loop_exit
    _

</llo_original>
